<compile_context>
chip_gen: v7x
topology: tpu7x:2x2x1
jax: 0.10.0
libtpu: 0.0.40
codegen_flags: <defaults>
</compile_context>

<pallas_src>
import jax
import jax.numpy as jnp
from jax.experimental import pallas as pl
from jax.experimental.pallas import tpu as pltpu


def _round_up(v, m):
    return ((v + m - 1) // m) * m


def _ffn_kernel_single(x_ref, w1_ref, b1_ref, w2_ref, b2_ref, o_ref):
    """d_ff fits in one chunk: no reduction axis, no scratch accumulator."""
    h = jnp.dot(x_ref[...], w1_ref[...], preferred_element_type=jnp.float32)
    h = jnp.maximum(h + b1_ref[...], 0.0)                 # f32 VPU math
    y = jnp.dot(h.astype(w2_ref.dtype), w2_ref[...],
                preferred_element_type=jnp.float32)
    o_ref[...] = (y + b2_ref[...]).astype(o_ref.dtype)


def _ffn_kernel(x_ref, w1_ref, b1_ref, w2_ref, b2_ref, o_ref, acc_ref):
    """General path: d_ff is split into chunks along the last grid axis."""
    k = pl.program_id(1)

    @pl.when(k == 0)
    def _init():
        acc_ref[...] = jnp.zeros_like(acc_ref)

    # First linear (bf16 MXU, f32 acc) + bias + ReLU on this d_ff chunk.
    h = jnp.dot(x_ref[...], w1_ref[...], preferred_element_type=jnp.float32)
    h = jnp.maximum(h + b1_ref[...], 0.0)                  # f32 VPU math

    # Second linear: accumulate this chunk's contribution.
    acc_ref[...] += jnp.dot(h.astype(w2_ref.dtype), w2_ref[...],
                            preferred_element_type=jnp.float32)

    @pl.when(k == pl.num_programs(1) - 1)
    def _finalize():
        o_ref[...] = (acc_ref[...] + b2_ref[...]).astype(o_ref.dtype)


def feed_forward(x, w1, b1, w2, b2, *, tm_target=256, tf_target=512):
    """x: (..., d_model); w1: (d_model, d_ff); w2: (d_ff, d_model).

    Weights are stored transposed relative to torch.nn.Linear, so the hot path
    is relu(x @ W1 + b1) @ W2 + b2.
    """
    orig_shape = x.shape
    d_model = orig_shape[-1]
    d_ff = w1.shape[1]
    x2d = x.reshape(-1, d_model)
    n = x2d.shape[0]

    # --- padded / tiled sizes -------------------------------------------------
    d_model_p = _round_up(d_model, 128)                    # lane-dense output
    d_ff_p = _round_up(d_ff, 128)
    tf = min(tf_target, d_ff_p)                            # d_ff reduction chunk
    d_ff_p = _round_up(d_ff_p, tf)

    n_p = _round_up(n, 8)
    tm = min(tm_target, n_p)                               # row tile (mult of 8)
    n_p = _round_up(n, tm)

    # --- pad + cast once in the wrapper (not per grid step) -------------------
    xp = jnp.pad(x2d, ((0, n_p - n), (0, d_model_p - d_model))).astype(jnp.bfloat16)
    w1p = jnp.pad(w1, ((0, d_model_p - d_model), (0, d_ff_p - d_ff))).astype(jnp.bfloat16)
    w2p = jnp.pad(w2, ((0, d_ff_p - d_ff), (0, d_model_p - d_model))).astype(jnp.bfloat16)
    b1p = jnp.pad(b1, (0, d_ff_p - d_ff)).reshape(1, d_ff_p).astype(jnp.float32)
    b2p = jnp.pad(b2, (0, d_model_p - d_model)).reshape(1, d_model_p).astype(jnp.float32)

    kt = d_ff_p // tf                                      # reduction steps
    flops = 2 * 2 * n_p * d_model_p * d_ff_p               # two matmuls
    bytes_accessed = (xp.size * 2 + w1p.size * 2 + w2p.size * 2 +
                      b1p.size * 4 + b2p.size * 4 +
                      n_p * d_model_p * jnp.dtype(x.dtype).itemsize)
    cost = pl.CostEstimate(flops=flops, transcendentals=0,
                           bytes_accessed=bytes_accessed)
    cparams_kwargs = dict(vmem_limit_bytes=64 * 1024 * 1024)

    if kt == 1:
        # Single d_ff chunk: 1-D grid, no accumulator scratch.
        out = pl.pallas_call(
            _ffn_kernel_single,
            out_shape=jax.ShapeDtypeStruct((n_p, d_model_p), x.dtype),
            grid_spec=pltpu.PrefetchScalarGridSpec(
                num_scalar_prefetch=0,
                grid=(n_p // tm,),
                in_specs=[
                    pl.BlockSpec((tm, d_model_p), lambda i: (i, 0)),   # x tile
                    pl.BlockSpec((d_model_p, tf), lambda i: (0, 0)),   # W1 (resident)
                    pl.BlockSpec((1, tf),         lambda i: (0, 0)),   # b1 (resident)
                    pl.BlockSpec((tf, d_model_p), lambda i: (0, 0)),   # W2 (resident)
                    pl.BlockSpec((1, d_model_p),  lambda i: (0, 0)),   # b2 (resident)
                ],
                out_specs=pl.BlockSpec((tm, d_model_p), lambda i: (i, 0)),
            ),
            compiler_params=pltpu.CompilerParams(
                dimension_semantics=("parallel",), **cparams_kwargs),
            cost_estimate=cost,
        )(xp, w1p, b1p, w2p, b2p)
    else:
        out = pl.pallas_call(
            _ffn_kernel,
            out_shape=jax.ShapeDtypeStruct((n_p, d_model_p), x.dtype),
            grid_spec=pltpu.PrefetchScalarGridSpec(
                num_scalar_prefetch=0,
                grid=(n_p // tm, kt),
                in_specs=[
                    pl.BlockSpec((tm, d_model_p), lambda i, k: (i, 0)),   # x tile
                    pl.BlockSpec((d_model_p, tf), lambda i, k: (0, k)),   # W1 slab
                    pl.BlockSpec((1, tf),         lambda i, k: (0, k)),   # b1 chunk
                    pl.BlockSpec((tf, d_model_p), lambda i, k: (k, 0)),   # W2 slab
                    pl.BlockSpec((1, d_model_p),  lambda i, k: (0, 0)),   # b2 (resident)
                ],
                out_specs=pl.BlockSpec((tm, d_model_p), lambda i, k: (i, 0)),
                scratch_shapes=[pltpu.VMEM((tm, d_model_p), jnp.float32)],
            ),
            compiler_params=pltpu.CompilerParams(
                dimension_semantics=("parallel", "arbitrary"), **cparams_kwargs),
            cost_estimate=cost,
        )(xp, w1p, b1p, w2p, b2p)

    return out[:n, :d_model].reshape(orig_shape)


if __name__ == "__main__":
    # Small shapes consistent with the module's forward: (batch, seq, d_model)
    batch, seq, d_model, d_ff = 2, 8, 32, 64

    key = jax.random.PRNGKey(0)
    kx, kw1, kb1, kw2, kb2 = jax.random.split(key, 5)

    x = jax.random.normal(kx, (batch, seq, d_model), dtype=jnp.float32)
    # Deterministic parameter init (roughly matching nn.Linear uniform scale).
    lim1 = 1.0 / (d_model ** 0.5)
    lim2 = 1.0 / (d_ff ** 0.5)
    w1 = jax.random.uniform(kw1, (d_model, d_ff), jnp.float32, -lim1, lim1)
    b1 = jax.random.uniform(kb1, (d_ff,), jnp.float32, -lim1, lim1)
    w2 = jax.random.uniform(kw2, (d_ff, d_model), jnp.float32, -lim2, lim2)
    b2 = jax.random.uniform(kb2, (d_model,), jnp.float32, -lim2, lim2)

    out = feed_forward(x, w1, b1, w2, b2)
    out = jax.block_until_ready(out)

    # Reference with matching bf16 MXU operands / f32 accumulation.
    x2d = x.reshape(-1, d_model)
    h_ref = jnp.maximum(
        jnp.dot(x2d.astype(jnp.bfloat16), w1.astype(jnp.bfloat16),
                preferred_element_type=jnp.float32) + b1, 0.0)
    ref = (jnp.dot(h_ref.astype(jnp.bfloat16), w2.astype(jnp.bfloat16),
                   preferred_element_type=jnp.float32) + b2)
    ref = ref.reshape(batch, seq, d_model)

    assert out.shape == (batch, seq, d_model)
    assert jnp.allclose(out, ref, atol=1e-3, rtol=1e-3)

    # Sanity vs. pure-f32 math (looser tolerance for bf16 operands).
    ref_f32 = (jnp.maximum(x2d @ w1 + b1, 0.0) @ w2 + b2).reshape(batch, seq, d_model)
    assert jnp.allclose(out, ref_f32, atol=5e-2, rtol=5e-2)

    # Also exercise the multi-chunk (reduction-axis) path at a slightly larger
    # d_ff to make sure both kernels stay correct.
    d_ff_big = 1536
    kw3, kb3, kw4, kb4 = jax.random.split(kb2, 4)
    lim3 = 1.0 / (d_model ** 0.5)
    lim4 = 1.0 / (d_ff_big ** 0.5)
    w1b = jax.random.uniform(kw3, (d_model, d_ff_big), jnp.float32, -lim3, lim3)
    b1b = jax.random.uniform(kb3, (d_ff_big,), jnp.float32, -lim3, lim3)
    w2b = jax.random.uniform(kw4, (d_ff_big, d_model), jnp.float32, -lim4, lim4)
    b2b = jax.random.uniform(kb4, (d_model,), jnp.float32, -lim4, lim4)
    out_b = jax.block_until_ready(feed_forward(x, w1b, b1b, w2b, b2b))
    ref_b = (jnp.maximum(x2d @ w1b + b1b, 0.0) @ w2b + b2b).reshape(batch, seq, d_model)
    assert jnp.allclose(out_b, ref_b, atol=5e-2, rtol=5e-2)

    print("KERNEL_OK")
</pallas_src>

<mosaic_0001>
module attributes {stable_mosaic.version = 11 : i64} {
  func.func @_ffn_kernel_single(%arg0: i32, %arg1: memref<16x128xbf16, #tpu.memory_space<vmem>>, %arg2: memref<128x128xbf16, #tpu.memory_space<vmem>>, %arg3: memref<1x128xf32, #tpu.memory_space<vmem>>, %arg4: memref<128x128xbf16, #tpu.memory_space<vmem>>, %arg5: memref<1x128xf32, #tpu.memory_space<vmem>>, %arg6: memref<16x128xf32, #tpu.memory_space<vmem>>) attributes {dimension_semantics = [#tpu.dimension_semantics<parallel>], iteration_bounds = array<i64: 1>, scalar_prefetch = 0 : i64, scratch_operands = 0 : i64, tpu.core_type = #tpu.core_type<tc>, window_params = [{transform_indices = @transform_0, window_bounds = array<i64: 16, 128>}, {pipeline_mode = #tpu.pipeline_mode<synchronous>, transform_indices = @transform_1, window_bounds = array<i64: 128, 128>}, {pipeline_mode = #tpu.pipeline_mode<synchronous>, transform_indices = @transform_2, window_bounds = array<i64: 1, 128>}, {pipeline_mode = #tpu.pipeline_mode<synchronous>, transform_indices = @transform_3, window_bounds = array<i64: 128, 128>}, {pipeline_mode = #tpu.pipeline_mode<synchronous>, transform_indices = @transform_4, window_bounds = array<i64: 1, 128>}, {transform_indices = @transform_5, window_bounds = array<i64: 16, 128>}]} {
    %c0 = arith.constant 0 : index
    %c0_0 = arith.constant 0 : index
    %0 = vector.load %arg1[%c0, %c0_0] : memref<16x128xbf16, #tpu.memory_space<vmem>>, vector<16x128xbf16>
    %c0_1 = arith.constant 0 : index
    %c0_2 = arith.constant 0 : index
    %1 = vector.load %arg2[%c0_1, %c0_2] : memref<128x128xbf16, #tpu.memory_space<vmem>>, vector<128x128xbf16>
    %cst = arith.constant dense<0.000000e+00> : vector<16x128xf32>
    %2 = tpu.matmul %0, %1, %cst {dimension_numbers = #tpu.dot_dimension_numbers<[1], [0], [0], [1], [0, 0, 1, 1], [], []>} : vector<16x128xbf16>, vector<128x128xbf16>, vector<16x128xf32> -> vector<16x128xf32>
    %c0_3 = arith.constant 0 : index
    %c0_4 = arith.constant 0 : index
    %3 = vector.load %arg3[%c0_3, %c0_4] : memref<1x128xf32, #tpu.memory_space<vmem>>, vector<1x128xf32>
    %4 = vector.broadcast %3 : vector<1x128xf32> to vector<16x128xf32>
    %5 = arith.addf %2, %4 : vector<16x128xf32>
    %cst_5 = arith.constant 0.000000e+00 : f32
    %6 = vector.broadcast %cst_5 : f32 to vector<16x128xf32>
    %7 = arith.maximumf %5, %6 : vector<16x128xf32>
    %8 = arith.truncf %7 : vector<16x128xf32> to vector<16x128xbf16>
    %c0_6 = arith.constant 0 : index
    %c0_7 = arith.constant 0 : index
    %9 = vector.load %arg4[%c0_6, %c0_7] : memref<128x128xbf16, #tpu.memory_space<vmem>>, vector<128x128xbf16>
    %cst_8 = arith.constant dense<0.000000e+00> : vector<16x128xf32>
    %10 = tpu.matmul %8, %9, %cst_8 {dimension_numbers = #tpu.dot_dimension_numbers<[1], [0], [0], [1], [0, 0, 1, 1], [], []>} : vector<16x128xbf16>, vector<128x128xbf16>, vector<16x128xf32> -> vector<16x128xf32>
    %c0_9 = arith.constant 0 : index
    %c0_10 = arith.constant 0 : index
    %11 = vector.load %arg5[%c0_9, %c0_10] : memref<1x128xf32, #tpu.memory_space<vmem>>, vector<1x128xf32>
    %12 = vector.broadcast %11 : vector<1x128xf32> to vector<16x128xf32>
    %13 = arith.addf %10, %12 : vector<16x128xf32>
    %c0_11 = arith.constant 0 : index
    %c0_12 = arith.constant 0 : index
    %14 = vector.load %arg6[%c0_11, %c0_12] : memref<16x128xf32, #tpu.memory_space<vmem>>, vector<16x128xf32>
    tpu.vector_store %arg6[%c0_11, %c0_12], %13 {strides = array<i32>} : memref<16x128xf32, #tpu.memory_space<vmem>>, vector<16x128xf32>,
    return
  }
  func.func @transform_0(%arg0: i32) -> (i32, i32) {
    %c0_i32 = arith.constant 0 : i32
    %c0_i32_0 = arith.constant 0 : i32
    return %arg0, %c0_i32 : i32, i32
  }
  func.func @transform_1(%arg0: i32) -> (i32, i32) {
    %c0_i32 = arith.constant 0 : i32
    %c0_i32_0 = arith.constant 0 : i32
    %c0_i32_1 = arith.constant 0 : i32
    return %c0_i32, %c0_i32_0 : i32, i32
  }
  func.func @transform_2(%arg0: i32) -> (i32, i32) {
    %c0_i32 = arith.constant 0 : i32
    %c0_i32_0 = arith.constant 0 : i32
    %c0_i32_1 = arith.constant 0 : i32
    return %c0_i32, %c0_i32_0 : i32, i32
  }
  func.func @transform_3(%arg0: i32) -> (i32, i32) {
    %c0_i32 = arith.constant 0 : i32
    %c0_i32_0 = arith.constant 0 : i32
    %c0_i32_1 = arith.constant 0 : i32
    return %c0_i32, %c0_i32_0 : i32, i32
  }
  func.func @transform_4(%arg0: i32) -> (i32, i32) {
    %c0_i32 = arith.constant 0 : i32
    %c0_i32_0 = arith.constant 0 : i32
    %c0_i32_1 = arith.constant 0 : i32
    return %c0_i32, %c0_i32_0 : i32, i32
  }
  func.func @transform_5(%arg0: i32) -> (i32, i32) {
    %c0_i32 = arith.constant 0 : i32
    %c0_i32_0 = arith.constant 0 : i32
    return %arg0, %c0_i32 : i32, i32
  }
}

</mosaic_0001>

<llo_original>
// kernel: tpu_custom_call.1
$region0: #{tpu_custom_call.1}
  #allocation0 [shape = 'u32[]', space=smem, size = 0x4, offset = 0x4, fixed_abs, tag = 'smem constant byte address 0x4 - core index']
  #allocation1 [shape = 'u32[144,128]{1,0:T(1,128)}', space=vmem, size = 0x12000, scoped, tag = 'internal scratch']
  %s0 = inlined_call_operand.hbm [shape: bf16[16,128], index: 0, kind: input, shape index: {}]
  %s1 = inlined_call_operand.hbm [shape: bf16[128,128], index: 1, kind: input, shape index: {}]
  %s2 = inlined_call_operand.hbm [shape: f32[1,128], index: 2, kind: input, shape index: {}]
  %s3 = inlined_call_operand.hbm [shape: bf16[128,128], index: 3, kind: input, shape index: {}]
  %s4 = inlined_call_operand.hbm [shape: f32[1,128], index: 4, kind: input, shape index: {}]
  %s5 = inlined_call_operand.hbm [shape: f32[16,128], index: 5, kind: output, shape index: {}]
  %s6 = sld [smem:[#allocation0]]
  $region50: #{tpu_custom_call.1} parent=0
    _
  %s8 = ssub.s32 1, %s6
  %s9 = scalar_select 0, %s8, %s6
  $region1: #{tpu_custom_call.1} parent=0
    #allocation2 [shape = 'u8[4096]{0}', space=vmem, size = 0x1000, scoped, tag = 'input window, operand 0, single buffered']
    #allocation3 [shape = 's32[1]{0}', space=sflag, size = 0x4, scoped, tag = 'scoped memory for tpu_custom_call.1']
    #allocation4 [shape = 's32[1]{0}', space=sflag, size = 0x4, scoped, tag = 'scoped memory for tpu_custom_call.1']
    #allocation5 [shape = 'u8[32768]{0}', space=vmem, size = 0x8000, scoped, tag = 'input window, operand 1, single buffered']
    #allocation6 [shape = 's32[1]{0}', space=sflag, size = 0x4, scoped, tag = 'scoped memory for tpu_custom_call.1']
    #allocation7 [shape = 'u8[512]{0}', space=vmem, size = 0x400, scoped, tag = 'input window, operand 2, single buffered']
    #allocation8 [shape = 'u8[32768]{0}', space=vmem, size = 0x8000, scoped, tag = 'input window, operand 3, single buffered']
    #allocation9 [shape = 's32[1]{0}', space=sflag, size = 0x4, scoped, tag = 'scoped memory for tpu_custom_call.1']
    #allocation10 [shape = 'u8[512]{0}', space=vmem, size = 0x400, scoped, tag = 'input window, operand 4, single buffered']
    #allocation11 [shape = 'u8[8192]{0}', space=vmem, size = 0x2000, scoped, tag = 'output window, operand 0, single buffered']
    %10 = vsyncpa [#allocation3], 0
    %11 = vsyncpa [#allocation6], 0
    %12 = vsyncpa [#allocation9], 0
    %13 = vsyncpa [#allocation4], 0
    // Predicated region
    $region2: #{tpu_custom_call.1} parent=1 // pred_check
      _
    $region3: #{tpu_custom_call.1} parent=1 // pred_check_branch
      %15 = sbr.rel (0) target = $region5
    $region4: #{tpu_custom_call.1} parent=1 // pred_region
      %s17 = ssub.s32 128, 128
      %18 = vsyncadd [#allocation3], %s17
      %s19 = sshll.u32 [#allocation2], 4
      %s20 = int_to_ptr.vmem [resolvable:$true] %s19
      %25 = dma.hbm_to_vmem [thread:$0]  %s0, 128, %s20, [#allocation3], 64, 64, 4
    $region5: #{tpu_custom_call.1} parent=1 // pred_fallthru
      _
    // Predicated region
    $region6: #{tpu_custom_call.1} parent=1 // pred_check
      _
    $region7: #{tpu_custom_call.1} parent=1 // pred_check_branch
      %27 = sbr.rel (0) target = $region9
    $region8: #{tpu_custom_call.1} parent=1 // pred_region
      %s29 = ssub.s32 1024, 1024
      %30 = vsyncadd [#allocation6], %s29
      %s31 = sshll.u32 [#allocation5], 4
      %s32 = int_to_ptr.vmem [resolvable:$true] %s31
      %37 = dma.hbm_to_vmem [thread:$0]  %s1, 1024, %s32, [#allocation6], 64, 64, 4
    $region9: #{tpu_custom_call.1} parent=1 // pred_fallthru
      _
    // Predicated region
    $region10: #{tpu_custom_call.1} parent=1 // pred_check
      _
    $region11: #{tpu_custom_call.1} parent=1 // pred_check_branch
      %39 = sbr.rel (0) target = $region13
    $region12: #{tpu_custom_call.1} parent=1 // pred_region
      %s41 = ssub.s32 16, 16
      %42 = vsyncadd [#allocation6], %s41
      %s44 = sshll.u32 [#allocation7], 4
      %s45 = int_to_ptr.vmem [resolvable:$true] %s44
      %47 = dma.hbm_to_vmem [thread:$0]  %s2, 16, %s45, [#allocation6]
    $region13: #{tpu_custom_call.1} parent=1 // pred_fallthru
      _
    // Predicated region
    $region14: #{tpu_custom_call.1} parent=1 // pred_check
      _
    $region15: #{tpu_custom_call.1} parent=1 // pred_check_branch
      %49 = sbr.rel (0) target = $region17
    $region16: #{tpu_custom_call.1} parent=1 // pred_region
      %s51 = ssub.s32 1024, 1024
      %52 = vsyncadd [#allocation9], %s51
      %s53 = sshll.u32 [#allocation8], 4
      %s54 = int_to_ptr.vmem [resolvable:$true] %s53
      %59 = dma.hbm_to_vmem [thread:$0]  %s3, 1024, %s54, [#allocation9], 64, 64, 4
    $region17: #{tpu_custom_call.1} parent=1 // pred_fallthru
      _
    // Predicated region
    $region18: #{tpu_custom_call.1} parent=1 // pred_check
      _
    $region19: #{tpu_custom_call.1} parent=1 // pred_check_branch
      %61 = sbr.rel (0) target = $region21
    $region20: #{tpu_custom_call.1} parent=1 // pred_region
      %s63 = ssub.s32 16, 16
      %64 = vsyncadd [#allocation9], %s63
      %s66 = sshll.u32 [#allocation10], 4
      %s67 = int_to_ptr.vmem [resolvable:$true] %s66
      %69 = dma.hbm_to_vmem [thread:$0]  %s4, 16, %s67, [#allocation9]
    $region21: #{tpu_custom_call.1} parent=1 // pred_fallthru
      _
    // Predicated region
    $region22: #{tpu_custom_call.1} parent=1 // pred_check
      _
    $region23: #{tpu_custom_call.1} parent=1 // pred_check_branch
      %71 = sbr.rel (0) target = $region25
    $region24: #{tpu_custom_call.1} parent=1 // pred_region
      %72 = dma.done [#allocation3], 128
    $region25: #{tpu_custom_call.1} parent=1 // pred_fallthru
      _
    // Predicated region
    $region26: #{tpu_custom_call.1} parent=1 // pred_check
      _
    $region27: #{tpu_custom_call.1} parent=1 // pred_check_branch
      %74 = sbr.rel (0) target = $region29
    $region28: #{tpu_custom_call.1} parent=1 // pred_region
      %75 = dma.done [#allocation6], 1024
    $region29: #{tpu_custom_call.1} parent=1 // pred_fallthru
      _
    // Predicated region
    $region30: #{tpu_custom_call.1} parent=1 // pred_check
      _
    $region31: #{tpu_custom_call.1} parent=1 // pred_check_branch
      %77 = sbr.rel (0) target = $region33
    $region32: #{tpu_custom_call.1} parent=1 // pred_region
      %78 = dma.done [#allocation6], 16
    $region33: #{tpu_custom_call.1} parent=1 // pred_fallthru
      _
    // Predicated region
    $region34: #{tpu_custom_call.1} parent=1 // pred_check
      _
    $region35: #{tpu_custom_call.1} parent=1 // pred_check_branch
      %80 = sbr.rel (0) target = $region37
    $region36: #{tpu_custom_call.1} parent=1 // pred_region
      %81 = dma.done [#allocation9], 1024
    $region37: #{tpu_custom_call.1} parent=1 // pred_fallthru
      _
    // Predicated region
    $region38: #{tpu_custom_call.1} parent=1 // pred_check
      _
    $region39: #{tpu_custom_call.1} parent=1 // pred_check_branch
      %83 = sbr.rel (0) target = $region41
    $region40: #{tpu_custom_call.1} parent=1 // pred_region
      %84 = dma.done [#allocation9], 16
    $region41: #{tpu_custom_call.1} parent=1 // pred_fallthru
      _
    %v86 = vld [vmem:[#allocation2] sm:$0xf]
    %v87 = vld [vmem:[#allocation2 + $0x4] sm:$0xf]
    %v88 = vld [vmem:[#allocation5] sm:$0xf]
    %v89 = vld [vmem:[#allocation5 + $0x4] sm:$0xf]
    %v90 = vld [vmem:[#allocation5 + $0x8] sm:$0xf]
    %v91 = vld [vmem:[#allocation5 + $0xc] sm:$0xf]
    %v92 = vld [vmem:[#allocation5 + $0x10] sm:$0xf]
    %v93 = vld [vmem:[#allocation5 + $0x14] sm:$0xf]
    %v94 = vld [vmem:[#allocation5 + $0x18] sm:$0xf]
    %v95 = vld [vmem:[#allocation5 + $0x1c] sm:$0xf]
    %v96 = vld [vmem:[#allocation5 + $0x20] sm:$0xf]
    %v97 = vld [vmem:[#allocation5 + $0x24] sm:$0xf]
    %v98 = vld [vmem:[#allocation5 + $0x28] sm:$0xf]
    %v99 = vld [vmem:[#allocation5 + $0x2c] sm:$0xf]
    %v100 = vld [vmem:[#allocation5 + $0x30] sm:$0xf]
    %v101 = vld [vmem:[#allocation5 + $0x34] sm:$0xf]
    %v102 = vld [vmem:[#allocation5 + $0x38] sm:$0xf]
    %v103 = vld [vmem:[#allocation5 + $0x3c] sm:$0xf]
    %v104 = vld [vmem:[#allocation7] sm:$0x1]
    %v106 = vlaneseq
    %v107 = vshrl.u32 %v106, 7
    %v108 = vsub.s32 0, %v107
    %v109 = vrot.slane %v104, %v108
    %v113 = vunpack.c.l.b16 %v86
    %v114 = vunpack.c.l.b16 %v87
    %v115 = vpack.c.b16 %v114, %v113
    %v133 = vunpack.c.l.b16 %v88
    %v134 = vunpack.c.l.b16 %v89
    %v135 = vunpack.c.l.b16 %v90
    %v136 = vunpack.c.l.b16 %v91
    %v137 = vunpack.c.l.b16 %v92
    %v138 = vunpack.c.l.b16 %v93
    %v139 = vunpack.c.l.b16 %v94
    %v140 = vunpack.c.l.b16 %v95
    %v141 = vunpack.c.l.b16 %v96
    %v142 = vunpack.c.l.b16 %v97
    %v143 = vunpack.c.l.b16 %v98
    %v144 = vunpack.c.l.b16 %v99
    %v145 = vunpack.c.l.b16 %v100
    %v146 = vunpack.c.l.b16 %v101
    %v147 = vunpack.c.l.b16 %v102
    %v148 = vunpack.c.l.b16 %v103
    %v149 = vpack.c.b16 %v134, %v133
    %v150 = vpack.c.b16 %v136, %v135
    %v151 = vpack.c.b16 %v138, %v137
    %v152 = vpack.c.b16 %v140, %v139
    %v153 = vpack.c.b16 %v142, %v141
    %v154 = vpack.c.b16 %v144, %v143
    %v155 = vpack.c.b16 %v146, %v145
    %v156 = vpack.c.b16 %v148, %v147
    %165 = vmatprep.subr.bf16.mxu0 0
    %166 = vmatpush1.bf16.msra.mxu0 %v149
    %167 = vmatprep.subr.bf16.mxu0 0
    %168 = vmatpush1.bf16.msra.mxu0 %v150
    %169 = vmatprep.subr.bf16.mxu0 0
    %170 = vmatpush1.bf16.msra.mxu0 %v151
    %171 = vmatprep.subr.bf16.mxu0 0
    %172 = vmatpush1.bf16.msra.mxu0 %v152
    %173 = vmatprep.subr.bf16.mxu0 0
    %174 = vmatpush1.bf16.msra.mxu0 %v153
    %175 = vmatprep.subr.bf16.mxu0 0
    %176 = vmatpush1.bf16.msra.mxu0 %v154
    %177 = vmatprep.subr.bf16.mxu0 0
    %178 = vmatpush1.bf16.msra.mxu0 %v155
    %179 = vmatprep.subr.bf16.mxu0 0
    %180 = vmatpush1.bf16.msra.mxu0 %v156
    %181 = vmatprep.subr.bf16.mxu0 0
    %182 = vmatpush1.bf16.msra.mxu0 0
    %183 = vmatprep.subr.bf16.mxu0 0
    %184 = vmatpush1.bf16.msra.mxu0 0
    %185 = vmatprep.subr.bf16.mxu0 0
    %186 = vmatpush1.bf16.msra.mxu0 0
    %187 = vmatprep.subr.bf16.mxu0 0
    %188 = vmatpush1.bf16.msra.mxu0 0
    %189 = vmatprep.subr.bf16.mxu0 0
    %190 = vmatpush1.bf16.msra.mxu0 0
    %191 = vmatprep.subr.bf16.mxu0 0
    %192 = vmatpush1.bf16.msra.mxu0 0
    %193 = vmatprep.subr.bf16.mxu0 0
    %194 = vmatpush1.bf16.msra.mxu0 0
    %195 = vmatprep.subr.bf16.mxu0 0
    %196 = vmatpush1.bf16.msra.mxu0 0
    %197 = vmatprep.mubr.bf16.mxu0 0
    %198 = vmatmul.mubr.bf16.gmra.mrb[0].mxu0 %v115
    %v199 = vpop.f32.mrb[0].mxu0
    %v200 = vadd.f32 %v109, %v199
    %v201 = vpop.f32.mrb[0].mxu0
    %v202 = vpop.f32.mrb[0].mxu0
    %v203 = vadd.f32 %v109, %v202
    %v204 = vpop.f32.mrb[0].mxu0
    %205 = vdwg.mxu0
    %v206 = vmax.f32 %v200, 0.0
    %v207 = vmax.f32 %v203, 0.0
    %v208 = vpack.c.bf16 %v207, %v206
    %v209 = vld [vmem:[#allocation8] sm:$0xf]
    %v210 = vld [vmem:[#allocation8 + $0x4] sm:$0xf]
    %v211 = vld [vmem:[#allocation8 + $0x8] sm:$0xf]
    %v212 = vld [vmem:[#allocation8 + $0xc] sm:$0xf]
    %v213 = vld [vmem:[#allocation8 + $0x10] sm:$0xf]
    %v214 = vld [vmem:[#allocation8 + $0x14] sm:$0xf]
    %v215 = vld [vmem:[#allocation8 + $0x18] sm:$0xf]
    %v216 = vld [vmem:[#allocation8 + $0x1c] sm:$0xf]
    %v217 = vld [vmem:[#allocation8 + $0x20] sm:$0xf]
    %v218 = vld [vmem:[#allocation8 + $0x24] sm:$0xf]
    %v219 = vld [vmem:[#allocation8 + $0x28] sm:$0xf]
    %v220 = vld [vmem:[#allocation8 + $0x2c] sm:$0xf]
    %v221 = vld [vmem:[#allocation8 + $0x30] sm:$0xf]
    %v222 = vld [vmem:[#allocation8 + $0x34] sm:$0xf]
    %v223 = vld [vmem:[#allocation8 + $0x38] sm:$0xf]
    %v224 = vld [vmem:[#allocation8 + $0x3c] sm:$0xf]
    %v225 = vld [vmem:[#allocation10] sm:$0x1]
    %v227 = vlaneseq
    %v228 = vshrl.u32 %v227, 7
    %v229 = vsub.s32 0, %v228
    %v230 = vrot.slane %v225, %v229
    %v248 = vunpack.c.l.b16 %v209
    %v249 = vunpack.c.l.b16 %v210
    %v250 = vunpack.c.l.b16 %v211
    %v251 = vunpack.c.l.b16 %v212
    %v252 = vunpack.c.l.b16 %v213
    %v253 = vunpack.c.l.b16 %v214
    %v254 = vunpack.c.l.b16 %v215
    %v255 = vunpack.c.l.b16 %v216
    %v256 = vunpack.c.l.b16 %v217
    %v257 = vunpack.c.l.b16 %v218
    %v258 = vunpack.c.l.b16 %v219
    %v259 = vunpack.c.l.b16 %v220
    %v260 = vunpack.c.l.b16 %v221
    %v261 = vunpack.c.l.b16 %v222
    %v262 = vunpack.c.l.b16 %v223
    %v263 = vunpack.c.l.b16 %v224
    %v264 = vpack.c.b16 %v249, %v248
    %v265 = vpack.c.b16 %v251, %v250
    %v266 = vpack.c.b16 %v253, %v252
    %v267 = vpack.c.b16 %v255, %v254
    %v268 = vpack.c.b16 %v257, %v256
    %v269 = vpack.c.b16 %v259, %v258
    %v270 = vpack.c.b16 %v261, %v260
    %v271 = vpack.c.b16 %v263, %v262
    %280 = vmatprep.subr.bf16.mxu0 0
    %281 = vmatpush1.bf16.msra.mxu0 %v264
    %282 = vmatprep.subr.bf16.mxu0 0
    %283 = vmatpush1.bf16.msra.mxu0 %v265
    %284 = vmatprep.subr.bf16.mxu0 0
    %285 = vmatpush1.bf16.msra.mxu0 %v266
    %286 = vmatprep.subr.bf16.mxu0 0
    %287 = vmatpush1.bf16.msra.mxu0 %v267
    %288 = vmatprep.subr.bf16.mxu0 0
    %289 = vmatpush1.bf16.msra.mxu0 %v268
    %290 = vmatprep.subr.bf16.mxu0 0
    %291 = vmatpush1.bf16.msra.mxu0 %v269
    %292 = vmatprep.subr.bf16.mxu0 0
    %293 = vmatpush1.bf16.msra.mxu0 %v270
    %294 = vmatprep.subr.bf16.mxu0 0
    %295 = vmatpush1.bf16.msra.mxu0 %v271
    %296 = vmatprep.subr.bf16.mxu0 0
    %297 = vmatpush1.bf16.msra.mxu0 0
    %298 = vmatprep.subr.bf16.mxu0 0
    %299 = vmatpush1.bf16.msra.mxu0 0
    %300 = vmatprep.subr.bf16.mxu0 0
    %301 = vmatpush1.bf16.msra.mxu0 0
    %302 = vmatprep.subr.bf16.mxu0 0
    %303 = vmatpush1.bf16.msra.mxu0 0
    %304 = vmatprep.subr.bf16.mxu0 0
    %305 = vmatpush1.bf16.msra.mxu0 0
    %306 = vmatprep.subr.bf16.mxu0 0
    %307 = vmatpush1.bf16.msra.mxu0 0
    %308 = vmatprep.subr.bf16.mxu0 0
    %309 = vmatpush1.bf16.msra.mxu0 0
    %310 = vmatprep.subr.bf16.mxu0 0
    %311 = vmatpush1.bf16.msra.mxu0 0
    %312 = vmatprep.mubr.bf16.mxu0 0
    %313 = vmatmul.mubr.bf16.gmra.mrb[0].mxu0 %v208
    %v314 = vpop.f32.mrb[0].mxu0
    %v315 = vadd.f32 %v230, %v314
    %v316 = vpop.f32.mrb[0].mxu0
    %v317 = vpop.f32.mrb[0].mxu0
    %v318 = vadd.f32 %v230, %v317
    %v319 = vpop.f32.mrb[0].mxu0
    %320 = vdwg.mxu0
    %321 = vst [vmem:[#allocation11] sm:$0xff] %v315
    %322 = vst [vmem:[#allocation11 + $0x8] sm:$0xff] %v318
    // Predicated region
    $region42: #{tpu_custom_call.1} parent=1 // pred_check
      _
    $region43: #{tpu_custom_call.1} parent=1 // pred_check_branch
      %324 = sbr.rel (0) target = $region45
    $region44: #{tpu_custom_call.1} parent=1 // pred_region
      %s326 = ssub.s32 256, 256
      %327 = vsyncadd [#allocation4], %s326
      %s328 = sshll.u32 [#allocation11], 4
      %s329 = int_to_ptr.vmem [resolvable:$true] %s328
      %334 = dma.vmem_to_hbm [thread:$0]  %s329, 256, %s5, [#allocation4], 128, 128, 8
    $region45: #{tpu_custom_call.1} parent=1 // pred_fallthru
      _
    // Predicated region
    $region46: #{tpu_custom_call.1} parent=1 // pred_check
      _
    $region47: #{tpu_custom_call.1} parent=1 // pred_check_branch
      %336 = sbr.rel (0) target = $region49
    $region48: #{tpu_custom_call.1} parent=1 // pred_region
      %337 = dma.done [#allocation4], 256
    $region49: #{tpu_custom_call.1} parent=1 // pred_fallthru
      _
    %338 = vsyncpa [#allocation3], 1
    %339 = vsyncpa [#allocation6], 1
    %340 = vsyncpa [#allocation9], 1
    %341 = vsyncpa [#allocation4], 1

</llo_original>
